<compile_context>
chip_gen: v5e
topology: v5e:2x2
jax: 0.10.0
libtpu: 0.0.40
codegen_flags: <defaults>
</compile_context>

<pallas_src>
import math

import jax
import jax.numpy as jnp
from jax.experimental import pallas as pl
from jax.experimental.pallas import tpu as pltpu

IN_F = 27          # input node-feature dim
HID = 64           # hidden dim
OUT_F = 16         # output of last Linear (loc | scale halves)
HALF = OUT_F // 2  # 8

# torchrl NormalParamExtractor (biased_softplus_1.0):
#   scale = softplus(x + inv_softplus(1.0 - 0.1)) + 0.1
SP_BIAS = math.log(math.expm1(1.0 - 0.1))


# --------------------------------------------------------------------------- #
# Kernel: whole forward pass, feature-major ([features, nodes]).
#   x_ref    : [27, m]   node features (feature-major tile)
#   adjt_ref : [m, m]    A^T where A[dst,src] += 1   (agg^T = h^T @ A^T)
#   w1_ref   : [64, 27]  W1^T
#   wg_ref   : [64, 128] (Wrel | Wroot)^T            (fused GraphConv matmul)
#   w2_ref   : [16, 64]  W2^T
#   b_ref    : [144, 1]  packed biases: b1 (0..63) | brel (64..127) | b2 (128..143)
#   out_ref  : [16, m]   rows 0..7 = loc, rows 8..15 = scale
# --------------------------------------------------------------------------- #
def actor_kernel(x_ref, adjt_ref, w1_ref, wg_ref, w2_ref, b_ref, out_ref):
    x = x_ref[...]                                        # [27, m]
    b = b_ref[...]                                        # [144, 1]
    b1 = b[:HID]                                          # [64, 1]
    brel = b[HID:2 * HID]                                 # [64, 1]
    b2 = b[2 * HID:]                                      # [16, 1]

    # Linear(27, 64); bias as a lane-broadcast add (VPU, free slot).
    h = jnp.dot(w1_ref[...], x,
                preferred_element_type=jnp.float32) + b1  # [64, m]

    # GraphConv 'add' aggregation: agg_i = sum_{j->i} h_j  =>  agg^T = h^T @ A^T
    agg = jnp.dot(h, adjt_ref[...],
                  preferred_element_type=jnp.float32)     # [64, m]

    # Fused lin_rel(agg) + lin_root(h) as one K=128 matmul (sublane-aligned concat).
    z = jnp.concatenate([agg, h], axis=0)                 # [128, m]
    g = jnp.tanh(jnp.dot(wg_ref[...], z,
                         preferred_element_type=jnp.float32) + brel)   # [64, m]

    # Linear(64, 16) + Tanh; loc and scale halves in one matmul.
    y = jnp.tanh(jnp.dot(w2_ref[...], g,
                         preferred_element_type=jnp.float32) + b2)     # [16, m]

    # NormalParamExtractor: loc = y[:8]; scale = softplus(y[8:] + bias) + 0.1.
    # (clamp_min(1e-4) is dead code: result always >= 0.1.)
    out_ref[:HALF, :] = y[:HALF]
    out_ref[HALF:, :] = (jax.nn.softplus(y[HALF:] + jnp.float32(SP_BIAS))
                         + jnp.float32(0.1))


# --------------------------------------------------------------------------- #
# Wrapper / glue
# --------------------------------------------------------------------------- #
def _actor_pallas(x_t, adjt, params, block_m):
    """Run the fused kernel over M nodes, tiled into row groups of block_m."""
    M = x_t.shape[1]
    assert M % block_m == 0 and adjt.shape == (M, M)
    grid = (M // block_m,)
    return pl.pallas_call(
        actor_kernel,
        out_shape=jax.ShapeDtypeStruct((OUT_F, M), jnp.float32),
        grid=grid,
        in_specs=[
            pl.BlockSpec((IN_F, block_m), lambda i: (0, i)),        # x (feature-major)
            pl.BlockSpec((block_m, block_m), lambda i: (i, i)),     # diagonal adjacency block
            pl.BlockSpec(params["w1_t"].shape, lambda i: (0, 0)),   # weights: whole slab,
            pl.BlockSpec(params["wg_t"].shape, lambda i: (0, 0)),   #   fetched once (block
            pl.BlockSpec(params["w2_t"].shape, lambda i: (0, 0)),   #   index never changes)
            pl.BlockSpec(params["bias"].shape, lambda i: (0, 0)),
        ],
        out_specs=pl.BlockSpec((OUT_F, block_m), lambda i: (0, i)),
        compiler_params=pltpu.CompilerParams(
            dimension_semantics=("parallel",)),                     # v7x: shard groups over TCs
    )(x_t, adjt, params["w1_t"], params["wg_t"], params["w2_t"], params["bias"])


def build_adjacency_t(edge_index, num_nodes):
    """Precompute A^T (A[dst,src] += 1) once; keep the scatter out of the hot path.

    For large graphs this dense O(N^2) matrix would blow VMEM (esp. v7x 64 MiB).
    """
    # TODO(synk): for large N, replace the dense adjacency with a scalar-prefetched
    # edge list + segment-sum (or tile the aggregation matmul) instead of A^T.
    src, dst = edge_index[0], edge_index[1]
    return jnp.zeros((num_nodes, num_nodes), jnp.float32).at[src, dst].add(1.0)


def single_node_actor_forward(x, adjt, params):
    """Non-list branch: x [N,27], adjt [N,N] -> loc [8,N], scale [8,N]
    (squeezed to [8] if N == 1), matching loc.t().squeeze(-1) of the module."""
    N = x.shape[0]
    out = _actor_pallas(x.T, adjt, params, block_m=N)
    loc, scale = out[:HALF], out[HALF:]                   # already the .t() layout
    if N == 1:
        loc, scale = loc[:, 0], scale[:, 0]
    return loc, scale


def single_node_actor_forward_batched(x, adjt, params, block_m=128):
    """List branch analog (Batch.from_data_list): x [M,27] stacked nodes of many
    graphs, adjt [M,M] block-diagonal.  Graphs must not straddle block_m
    boundaries (aggregation uses the diagonal adjacency block).
    Returns loc [M,8], scale [M,8]."""
    M = x.shape[0]
    Mp = -(-M // block_m) * block_m
    x_t = x.T
    if Mp != M:                                           # pad to a lane-dense multiple
        x_t = jnp.pad(x_t, ((0, 0), (0, Mp - M)))
        adjt = jnp.pad(adjt, ((0, Mp - M), (0, Mp - M)))
    out = _actor_pallas(x_t, adjt, params, block_m)[:, :M]
    return out[:HALF].T, out[HALF:].T


# --------------------------------------------------------------------------- #
# Parameters (PyTorch-style init) + packing into the fused slabs.
# --------------------------------------------------------------------------- #
def init_params(key):
    def lin(k, fan_in, fan_out, bias=True):
        k1, k2 = jax.random.split(k)
        bound = 1.0 / math.sqrt(fan_in)
        w = jax.random.uniform(k1, (fan_in, fan_out), jnp.float32, -bound, bound)
        b = (jax.random.uniform(k2, (fan_out,), jnp.float32, -bound, bound)
             if bias else jnp.zeros((fan_out,), jnp.float32))
        return w, b

    k1, k2, k3, k4 = jax.random.split(key, 4)
    w1, b1 = lin(k1, IN_F, HID)
    wrel, brel = lin(k2, HID, HID)            # GraphConv lin_rel (bias=True)
    wroot, _ = lin(k3, HID, HID, bias=False)  # GraphConv lin_root (bias=False)
    w2, b2 = lin(k4, HID, OUT_F)

    raw = dict(w1=w1, b1=b1, wrel=wrel, brel=brel, wroot=wroot, w2=w2, b2=b2)
    packed = dict(
        w1_t=w1.T,                                          # [64, 27]
        wg_t=jnp.concatenate([wrel, wroot], axis=0).T,      # [64, 128]
        w2_t=w2.T,                                          # [16, 64]
        bias=jnp.concatenate([b1, brel, b2])[:, None],      # [144, 1]
    )
    return packed, raw


def reference_forward(x, adj, raw):
    """Pure-JAX reference of the PyTorch forward (node-major)."""
    hi = jax.lax.Precision.HIGHEST
    h = jnp.dot(x, raw["w1"], precision=hi) + raw["b1"]
    agg = jnp.dot(adj, h, precision=hi)
    g = jnp.tanh(jnp.dot(agg, raw["wrel"], precision=hi) + raw["brel"]
                 + jnp.dot(h, raw["wroot"], precision=hi))
    y = jnp.tanh(jnp.dot(g, raw["w2"], precision=hi) + raw["b2"])
    loc, s = y[:, :HALF], y[:, HALF:]
    scale = jax.nn.softplus(s + SP_BIAS) + 0.1
    return loc, scale


# --------------------------------------------------------------------------- #
if __name__ == "__main__":
    key = jax.random.PRNGKey(0)
    kp, kx, kxb = jax.random.split(key, 3)
    params, raw = init_params(kp)

    # ---- single-graph path (non-list branch): 8-node bidirectional ring ----
    N = 8
    x = jax.random.normal(kx, (N, IN_F), jnp.float32)
    src = jnp.array(list(range(N)) + [(i + 1) % N for i in range(N)], jnp.int32)
    dst = jnp.array([(i + 1) % N for i in range(N)] + list(range(N)), jnp.int32)
    edge_index = jnp.stack([src, dst])                  # [2, 16]
    adj_t = build_adjacency_t(edge_index, N)            # precomputed once (static graph)

    loc, scale = jax.jit(single_node_actor_forward)(x, adj_t, params)
    loc = jax.block_until_ready(loc)
    scale = jax.block_until_ready(scale)
    assert loc.shape == (HALF, N) and scale.shape == (HALF, N)
    assert bool(jnp.all(scale > 0.0))

    ref_loc, ref_scale = reference_forward(x, adj_t.T, raw)
    assert bool(jnp.allclose(loc, ref_loc.T, atol=1e-3, rtol=1e-3))
    assert bool(jnp.allclose(scale, ref_scale.T, atol=1e-3, rtol=1e-3))

    # ---- batched path (list branch analog): 32 graphs x 8 nodes = 256 rows ----
    B = 32
    M = B * N
    xb = jax.random.normal(kxb, (M, IN_F), jnp.float32)
    offs = jnp.repeat(jnp.arange(B, dtype=jnp.int32) * N, 2 * N)
    edge_index_b = jnp.stack([jnp.tile(src, B) + offs, jnp.tile(dst, B) + offs])
    adj_t_b = build_adjacency_t(edge_index_b, M)        # block-diagonal

    fwd_batched = jax.jit(single_node_actor_forward_batched,
                          static_argnames=("block_m",))
    loc_b, scale_b = fwd_batched(xb, adj_t_b, params, block_m=128)
    loc_b = jax.block_until_ready(loc_b)
    scale_b = jax.block_until_ready(scale_b)
    assert loc_b.shape == (M, HALF) and scale_b.shape == (M, HALF)
    assert bool(jnp.all(scale_b > 0.0))

    ref_loc_b, ref_scale_b = reference_forward(xb, adj_t_b.T, raw)
    assert bool(jnp.allclose(loc_b, ref_loc_b, atol=1e-3, rtol=1e-3))
    assert bool(jnp.allclose(scale_b, ref_scale_b, atol=1e-3, rtol=1e-3))

    print("KERNEL_OK")
</pallas_src>

<mosaic_0001>
module attributes {stable_mosaic.version = 11 : i64} {
  func.func @actor_kernel(%arg0: i32, %arg1: memref<27x8xf32, #tpu.memory_space<vmem>>, %arg2: memref<8x8xf32, #tpu.memory_space<vmem>>, %arg3: memref<64x27xf32, #tpu.memory_space<vmem>>, %arg4: memref<64x128xf32, #tpu.memory_space<vmem>>, %arg5: memref<16x64xf32, #tpu.memory_space<vmem>>, %arg6: memref<144x1xf32, #tpu.memory_space<vmem>>, %arg7: memref<16x8xf32, #tpu.memory_space<vmem>>) attributes {dimension_semantics = [#tpu.dimension_semantics<parallel>], iteration_bounds = array<i64: 1>, scalar_prefetch = 0 : i64, scratch_operands = 0 : i64, tpu.core_type = #tpu.core_type<tc>, window_params = [{transform_indices = @transform_0, window_bounds = array<i64: 27, 8>}, {transform_indices = @transform_1, window_bounds = array<i64: 8, 8>}, {pipeline_mode = #tpu.pipeline_mode<synchronous>, transform_indices = @transform_2, window_bounds = array<i64: 64, 27>}, {pipeline_mode = #tpu.pipeline_mode<synchronous>, transform_indices = @transform_3, window_bounds = array<i64: 64, 128>}, {pipeline_mode = #tpu.pipeline_mode<synchronous>, transform_indices = @transform_4, window_bounds = array<i64: 16, 64>}, {pipeline_mode = #tpu.pipeline_mode<synchronous>, transform_indices = @transform_5, window_bounds = array<i64: 144, 1>}, {transform_indices = @transform_6, window_bounds = array<i64: 16, 8>}]} {
    %c0 = arith.constant 0 : index
    %c0_0 = arith.constant 0 : index
    %0 = vector.load %arg1[%c0, %c0_0] : memref<27x8xf32, #tpu.memory_space<vmem>>, vector<27x8xf32>
    %c0_1 = arith.constant 0 : index
    %c0_2 = arith.constant 0 : index
    %1 = vector.load %arg6[%c0_1, %c0_2] : memref<144x1xf32, #tpu.memory_space<vmem>>, vector<144x1xf32>
    %2 = vector.extract_strided_slice %1 {offsets = [0, 0], sizes = [64, 1], strides = [1, 1]} : vector<144x1xf32> to vector<64x1xf32>
    %3 = vector.extract_strided_slice %1 {offsets = [64, 0], sizes = [64, 1], strides = [1, 1]} : vector<144x1xf32> to vector<64x1xf32>
    %4 = vector.extract_strided_slice %1 {offsets = [128, 0], sizes = [16, 1], strides = [1, 1]} : vector<144x1xf32> to vector<16x1xf32>
    %c0_3 = arith.constant 0 : index
    %c0_4 = arith.constant 0 : index
    %5 = vector.load %arg3[%c0_3, %c0_4] : memref<64x27xf32, #tpu.memory_space<vmem>>, vector<64x27xf32>
    %cst = arith.constant dense<0.000000e+00> : vector<64x8xf32>
    %6 = tpu.matmul %5, %0, %cst {dimension_numbers = #tpu.dot_dimension_numbers<[1], [0], [0], [1], [0, 0, 1, 1], [], []>} : vector<64x27xf32>, vector<27x8xf32>, vector<64x8xf32> -> vector<64x8xf32>
    %7 = vector.broadcast %2 : vector<64x1xf32> to vector<64x8xf32>
    %8 = arith.addf %6, %7 : vector<64x8xf32>
    %c0_5 = arith.constant 0 : index
    %c0_6 = arith.constant 0 : index
    %9 = vector.load %arg2[%c0_5, %c0_6] : memref<8x8xf32, #tpu.memory_space<vmem>>, vector<8x8xf32>
    %cst_7 = arith.constant dense<0.000000e+00> : vector<64x8xf32>
    %10 = tpu.matmul %8, %9, %cst_7 {dimension_numbers = #tpu.dot_dimension_numbers<[1], [0], [0], [1], [0, 0, 1, 1], [], []>} : vector<64x8xf32>, vector<8x8xf32>, vector<64x8xf32> -> vector<64x8xf32>
    %11 = tpu.concatenate %10, %8 in 0 : vector<64x8xf32>, vector<64x8xf32> -> vector<128x8xf32>
    %c0_8 = arith.constant 0 : index
    %c0_9 = arith.constant 0 : index
    %12 = vector.load %arg4[%c0_8, %c0_9] : memref<64x128xf32, #tpu.memory_space<vmem>>, vector<64x128xf32>
    %cst_10 = arith.constant dense<0.000000e+00> : vector<64x8xf32>
    %13 = tpu.matmul %12, %11, %cst_10 {dimension_numbers = #tpu.dot_dimension_numbers<[1], [0], [0], [1], [0, 0, 1, 1], [], []>} : vector<64x128xf32>, vector<128x8xf32>, vector<64x8xf32> -> vector<64x8xf32>
    %14 = vector.broadcast %3 : vector<64x1xf32> to vector<64x8xf32>
    %15 = arith.addf %13, %14 : vector<64x8xf32>
    %16 = math.tanh %15 : vector<64x8xf32>
    %c0_11 = arith.constant 0 : index
    %c0_12 = arith.constant 0 : index
    %17 = vector.load %arg5[%c0_11, %c0_12] : memref<16x64xf32, #tpu.memory_space<vmem>>, vector<16x64xf32>
    %cst_13 = arith.constant dense<0.000000e+00> : vector<16x8xf32>
    %18 = tpu.matmul %17, %16, %cst_13 {dimension_numbers = #tpu.dot_dimension_numbers<[1], [0], [0], [1], [0, 0, 1, 1], [], []>} : vector<16x64xf32>, vector<64x8xf32>, vector<16x8xf32> -> vector<16x8xf32>
    %19 = vector.broadcast %4 : vector<16x1xf32> to vector<16x8xf32>
    %20 = arith.addf %18, %19 : vector<16x8xf32>
    %21 = math.tanh %20 : vector<16x8xf32>
    %22 = vector.extract_strided_slice %21 {offsets = [0, 0], sizes = [8, 8], strides = [1, 1]} : vector<16x8xf32> to vector<8x8xf32>
    %c0_14 = arith.constant 0 : index
    %c0_15 = arith.constant 0 : index
    %23 = vector.load %arg7[%c0_14, %c0_15] : memref<16x8xf32, #tpu.memory_space<vmem>>, vector<8x8xf32>
    tpu.vector_store %arg7[%c0_14, %c0_15], %22 {strides = array<i32>} : memref<16x8xf32, #tpu.memory_space<vmem>>, vector<8x8xf32>,
    %24 = vector.extract_strided_slice %21 {offsets = [8, 0], sizes = [8, 8], strides = [1, 1]} : vector<16x8xf32> to vector<8x8xf32>
    %cst_16 = arith.constant 0.37816456 : f32
    %25 = vector.broadcast %cst_16 : f32 to vector<8x8xf32>
    %26 = arith.addf %24, %25 : vector<8x8xf32>
    %cst_17 = arith.constant 0.000000e+00 : f32
    %27 = vector.broadcast %cst_17 : f32 to vector<8x8xf32>
    %28 = arith.maximumf %26, %27 : vector<8x8xf32>
    %29 = vector.broadcast %cst_17 : f32 to vector<8x8xf32>
    %30 = arith.subf %26, %29 : vector<8x8xf32>
    %31 = arith.cmpf one, %30, %30 : vector<8x8xf32>
    %32 = vector.broadcast %cst_17 : f32 to vector<8x8xf32>
    %33 = arith.addf %26, %32 : vector<8x8xf32>
    %34 = math.absf %30 : vector<8x8xf32>
    %cst_18 = arith.constant 0.000000e+00 : f32
    %35 = vector.broadcast %cst_18 : f32 to vector<8x8xf32>
    %36 = arith.subf %35, %34 : vector<8x8xf32>
    %37 = math.exp %36 : vector<8x8xf32>
    %38 = math.log1p %37 : vector<8x8xf32>
    %39 = arith.addf %28, %38 : vector<8x8xf32>
    %40 = arith.select %31, %33, %39 : vector<8x8xi1>, vector<8x8xf32>
    %cst_19 = arith.constant 1.000000e-01 : f32
    %41 = vector.broadcast %cst_19 : f32 to vector<8x8xf32>
    %42 = arith.addf %40, %41 : vector<8x8xf32>
    %c8 = arith.constant 8 : index
    %c0_20 = arith.constant 0 : index
    %43 = vector.load %arg7[%c8, %c0_20] : memref<16x8xf32, #tpu.memory_space<vmem>>, vector<8x8xf32>
    tpu.vector_store %arg7[%c8, %c0_20], %42 {strides = array<i32>} : memref<16x8xf32, #tpu.memory_space<vmem>>, vector<8x8xf32>,
    return
  }
  func.func @transform_0(%arg0: i32) -> (i32, i32) {
    %c0_i32 = arith.constant 0 : i32
    %c0_i32_0 = arith.constant 0 : i32
    return %c0_i32, %arg0 : i32, i32
  }
  func.func @transform_1(%arg0: i32) -> (i32, i32) {
    %c0_i32 = arith.constant 0 : i32
    return %arg0, %arg0 : i32, i32
  }
  func.func @transform_2(%arg0: i32) -> (i32, i32) {
    %c0_i32 = arith.constant 0 : i32
    %c0_i32_0 = arith.constant 0 : i32
    %c0_i32_1 = arith.constant 0 : i32
    return %c0_i32, %c0_i32_0 : i32, i32
  }
  func.func @transform_3(%arg0: i32) -> (i32, i32) {
    %c0_i32 = arith.constant 0 : i32
    %c0_i32_0 = arith.constant 0 : i32
    %c0_i32_1 = arith.constant 0 : i32
    return %c0_i32, %c0_i32_0 : i32, i32
  }
  func.func @transform_4(%arg0: i32) -> (i32, i32) {
    %c0_i32 = arith.constant 0 : i32
    %c0_i32_0 = arith.constant 0 : i32
    %c0_i32_1 = arith.constant 0 : i32
    return %c0_i32, %c0_i32_0 : i32, i32
  }
  func.func @transform_5(%arg0: i32) -> (i32, i32) {
    %c0_i32 = arith.constant 0 : i32
    %c0_i32_0 = arith.constant 0 : i32
    %c0_i32_1 = arith.constant 0 : i32
    return %c0_i32, %c0_i32_0 : i32, i32
  }
  func.func @transform_6(%arg0: i32) -> (i32, i32) {
    %c0_i32 = arith.constant 0 : i32
    %c0_i32_0 = arith.constant 0 : i32
    return %c0_i32, %arg0 : i32, i32
  }
}

</mosaic_0001>

<llo_original>
// kernel: single_node_actor_forward.1
$region0: #{single_node_actor_forward.1}
  #allocation0 [shape = 'u32[]', space=smem, size = 0x4, offset = 0x4, fixed_abs, tag = 'smem constant byte address 0x4 - core index']
  #allocation1 [shape = 'u32[72,128]{1,0:T(1,128)}', space=vmem, size = 0x9000, scoped, tag = 'internal scratch']
  %s0 = inlined_call_operand.vmem [shape: f32[27,8], index: 0, kind: input, shape index: {}]
  %s1 = inlined_call_operand.vmem [shape: f32[8,8], index: 1, kind: input, shape index: {}]
  %s2 = inlined_call_operand.vmem [shape: f32[64,27], index: 2, kind: input, shape index: {}]
  %s3 = inlined_call_operand.vmem [shape: f32[64,128], index: 3, kind: input, shape index: {}]
  %s4 = inlined_call_operand.vmem [shape: f32[16,64], index: 4, kind: input, shape index: {}]
  %s5 = inlined_call_operand.vmem [shape: f32[144,1], index: 5, kind: input, shape index: {}]
  %s6 = inlined_call_operand.vmem [shape: f32[16,8], index: 6, kind: output, shape index: {}]
  %s7 = sld [smem:[#allocation0]]
  $region34: #{single_node_actor_forward.1} parent=0
    _
  %s9 = ssub.s32 1, %s7
  %s10 = scalar_select 0, %s9, %s7
  // Predicated region
  $region2: #{single_node_actor_forward.1} parent=0 // pred_check
    _
  $region3: #{single_node_actor_forward.1} parent=0 // pred_check_branch
    %12 = sbr.rel (0) target = $region5
  $region4: #{single_node_actor_forward.1} parent=0 // pred_region
    _
  $region5: #{single_node_actor_forward.1} parent=0 // pred_fallthru
    _
  // Predicated region
  $region6: #{single_node_actor_forward.1} parent=0 // pred_check
    _
  $region7: #{single_node_actor_forward.1} parent=0 // pred_check_branch
    %14 = sbr.rel (0) target = $region9
  $region8: #{single_node_actor_forward.1} parent=0 // pred_region
    _
  $region9: #{single_node_actor_forward.1} parent=0 // pred_fallthru
    _
  // Predicated region
  $region10: #{single_node_actor_forward.1} parent=0 // pred_check
    _
  $region11: #{single_node_actor_forward.1} parent=0 // pred_check_branch
    %16 = sbr.rel (0) target = $region13
  $region12: #{single_node_actor_forward.1} parent=0 // pred_region
    _
  $region13: #{single_node_actor_forward.1} parent=0 // pred_fallthru
    _
  // Predicated region
  $region14: #{single_node_actor_forward.1} parent=0 // pred_check
    _
  $region15: #{single_node_actor_forward.1} parent=0 // pred_check_branch
    %18 = sbr.rel (0) target = $region17
  $region16: #{single_node_actor_forward.1} parent=0 // pred_region
    _
  $region17: #{single_node_actor_forward.1} parent=0 // pred_fallthru
    _
  // Predicated region
  $region18: #{single_node_actor_forward.1} parent=0 // pred_check
    _
  $region19: #{single_node_actor_forward.1} parent=0 // pred_check_branch
    %20 = sbr.rel (0) target = $region21
  $region20: #{single_node_actor_forward.1} parent=0 // pred_region
    _
  $region21: #{single_node_actor_forward.1} parent=0 // pred_fallthru
    _
  // Predicated region
  $region22: #{single_node_actor_forward.1} parent=0 // pred_check
    _
  $region23: #{single_node_actor_forward.1} parent=0 // pred_check_branch
    %22 = sbr.rel (0) target = $region25
  $region24: #{single_node_actor_forward.1} parent=0 // pred_region
    _
  $region25: #{single_node_actor_forward.1} parent=0 // pred_fallthru
    _
  %v23 = vld [vmem:[%s0] sm:$0xff]
  %v24 = vld [vmem:[%s0 + $0x8] sm:$0xff]
  %v25 = vld [vmem:[%s0 + $0x10] sm:$0xff]
  %v26 = vld [vmem:[%s0 + $0x18] sm:$0x7]
  %v27 = vld [vmem:[%s5] sm:$0xff]
  %v28 = vld [vmem:[%s5 + $0x8] sm:$0xff]
  %v29 = vld [vmem:[%s5 + $0x10] sm:$0xff]
  %v30 = vld [vmem:[%s5 + $0x18] sm:$0xff]
  %v31 = vld [vmem:[%s5 + $0x20] sm:$0xff]
  %v32 = vld [vmem:[%s5 + $0x28] sm:$0xff]
  %v33 = vld [vmem:[%s5 + $0x30] sm:$0xff]
  %v34 = vld [vmem:[%s5 + $0x38] sm:$0xff]
  %v35 = vld [vmem:[%s5 + $0x40] sm:$0xff]
  %v36 = vld [vmem:[%s5 + $0x48] sm:$0xff]
  %v37 = vld [vmem:[%s5 + $0x50] sm:$0xff]
  %v38 = vld [vmem:[%s5 + $0x58] sm:$0xff]
  %v39 = vld [vmem:[%s5 + $0x60] sm:$0xff]
  %v40 = vld [vmem:[%s5 + $0x68] sm:$0xff]
  %v41 = vld [vmem:[%s5 + $0x70] sm:$0xff]
  %v42 = vld [vmem:[%s5 + $0x78] sm:$0xff]
  %v43 = vld [vmem:[%s5 + $0x80] sm:$0xff]
  %v44 = vld [vmem:[%s5 + $0x88] sm:$0xff]
  %v45 = vld [vmem:[%s2] sm:$0xff]
  %v46 = vld [vmem:[%s2 + $0x8] sm:$0xff]
  %v47 = vld [vmem:[%s2 + $0x10] sm:$0xff]
  %v48 = vld [vmem:[%s2 + $0x18] sm:$0xff]
  %v49 = vld [vmem:[%s2 + $0x20] sm:$0xff]
  %v50 = vld [vmem:[%s2 + $0x28] sm:$0xff]
  %v51 = vld [vmem:[%s2 + $0x30] sm:$0xff]
  %v52 = vld [vmem:[%s2 + $0x38] sm:$0xff]
  %54 = vset.pattern.permute.xlu0 0
  %55 = vperm.xlu0 %54, %v27
  %v56 = vpop.permute.xlu0 %55
  %59 = vset.pattern.permute.xlu0 0
  %60 = vperm.xlu0 %59, %v28
  %v61 = vpop.permute.xlu0 %60
  %64 = vset.pattern.permute.xlu0 0
  %65 = vperm.xlu0 %64, %v29
  %v66 = vpop.permute.xlu0 %65
  %69 = vset.pattern.permute.xlu0 0
  %70 = vperm.xlu0 %69, %v30
  %v71 = vpop.permute.xlu0 %70
  %74 = vset.pattern.permute.xlu0 0
  %75 = vperm.xlu0 %74, %v31
  %v76 = vpop.permute.xlu0 %75
  %79 = vset.pattern.permute.xlu0 0
  %80 = vperm.xlu0 %79, %v32
  %v81 = vpop.permute.xlu0 %80
  %84 = vset.pattern.permute.xlu0 0
  %85 = vperm.xlu0 %84, %v33
  %v86 = vpop.permute.xlu0 %85
  %89 = vset.pattern.permute.xlu0 0
  %90 = vperm.xlu0 %89, %v34
  %v91 = vpop.permute.xlu0 %90
  %vm93 = vcmask 220160
  %v95 = vsel %vm93, %v45, 0
  %v98 = vsel %vm93, %v46, 0
  %v101 = vsel %vm93, %v47, 0
  %v104 = vsel %vm93, %v48, 0
  %v107 = vsel %vm93, %v49, 0
  %v110 = vsel %vm93, %v50, 0
  %v113 = vsel %vm93, %v51, 0
  %v116 = vsel %vm93, %v52, 0
  %vm118 = vcmask 1042432
  %v120 = vsel %vm118, %v26, 0
  %122 = vmatpush.msra.mxu0 0.0
  %123 = vmatpush.msra.mxu0 0.0
  %124 = vmatpush.msra.mxu0 0.0
  %125 = vmatpush.msra.mxu0 0.0
  %126 = vmatpush.msra.mxu0 0.0
  %127 = vmatpush.msra.mxu0 0.0
  %128 = vmatpush.msra.mxu0 0.0
  %129 = vmatpush.msra.mxu0 0.0
  %130 = vmatpush.msra.mxu0 0.0
  %131 = vmatpush.msra.mxu0 0.0
  %132 = vmatpush.msra.mxu0 0.0
  %133 = vmatpush.msra.mxu0 0.0
  %134 = vmatpush.msra.mxu0 %v120
  %135 = vmatpush.msra.mxu0 %v25
  %136 = vmatpush.msra.mxu0 %v24
  %137 = vmatpush.msra.mxu0 %v23
  %138 = vmatmul.f32.gmra.mxu0 %v95
  %v139 = vpop.f32.mrf.mxu0
  %v140 = vadd.f32 %v56, %v139
  %141 = vmatmul.f32.gmra.mxu0 %v98
  %v142 = vpop.f32.mrf.mxu0
  %v143 = vadd.f32 %v61, %v142
  %144 = vmatmul.f32.gmra.mxu0 %v101
  %v145 = vpop.f32.mrf.mxu0
  %v146 = vadd.f32 %v66, %v145
  %147 = vmatmul.f32.gmra.mxu0 %v104
  %v148 = vpop.f32.mrf.mxu0
  %v149 = vadd.f32 %v71, %v148
  %150 = vmatmul.f32.gmra.mxu0 %v107
  %v151 = vpop.f32.mrf.mxu0
  %v152 = vadd.f32 %v76, %v151
  %153 = vmatmul.f32.gmra.mxu0 %v110
  %v154 = vpop.f32.mrf.mxu0
  %v155 = vadd.f32 %v81, %v154
  %156 = vmatmul.f32.gmra.mxu0 %v113
  %v157 = vpop.f32.mrf.mxu0
  %v158 = vadd.f32 %v86, %v157
  %159 = vmatmul.f32.gmra.mxu0 %v116
  %v160 = vpop.f32.mrf.mxu0
  %v161 = vadd.f32 %v91, %v160
  %162 = vdwg.mxu0
  %v163 = vld [vmem:[%s1] sm:$0xff]
  %vm164 = vcmask 64512
  %v166 = vsel %vm164, %v140, 0
  %v169 = vsel %vm164, %v143, 0
  %v172 = vsel %vm164, %v146, 0
  %v175 = vsel %vm164, %v149, 0
  %v178 = vsel %vm164, %v152, 0
  %v181 = vsel %vm164, %v155, 0
  %v184 = vsel %vm164, %v158, 0
  %v187 = vsel %vm164, %v161, 0
  %189 = vmatpush.msra.mxu0 0.0
  %190 = vmatpush.msra.mxu0 0.0
  %191 = vmatpush.msra.mxu0 0.0
  %192 = vmatpush.msra.mxu0 0.0
  %193 = vmatpush.msra.mxu0 0.0
  %194 = vmatpush.msra.mxu0 0.0
  %195 = vmatpush.msra.mxu0 0.0
  %196 = vmatpush.msra.mxu0 0.0
  %197 = vmatpush.msra.mxu0 0.0
  %198 = vmatpush.msra.mxu0 0.0
  %199 = vmatpush.msra.mxu0 0.0
  %200 = vmatpush.msra.mxu0 0.0
  %201 = vmatpush.msra.mxu0 0.0
  %202 = vmatpush.msra.mxu0 0.0
  %203 = vmatpush.msra.mxu0 0.0
  %204 = vmatpush.msra.mxu0 %v163
  %205 = vmatmul.f32.gmra.mxu0 %v166
  %v206 = vpop.f32.mrf.mxu0
  %v207 = vadd.f32 0.0, %v206
  %208 = vmatmul.f32.gmra.mxu0 %v169
  %v209 = vpop.f32.mrf.mxu0
  %v210 = vadd.f32 0.0, %v209
  %211 = vmatmul.f32.gmra.mxu0 %v172
  %v212 = vpop.f32.mrf.mxu0
  %v213 = vadd.f32 0.0, %v212
  %214 = vmatmul.f32.gmra.mxu0 %v175
  %v215 = vpop.f32.mrf.mxu0
  %v216 = vadd.f32 0.0, %v215
  %217 = vmatmul.f32.gmra.mxu0 %v178
  %v218 = vpop.f32.mrf.mxu0
  %v219 = vadd.f32 0.0, %v218
  %220 = vmatmul.f32.gmra.mxu0 %v181
  %v221 = vpop.f32.mrf.mxu0
  %v222 = vadd.f32 0.0, %v221
  %223 = vmatmul.f32.gmra.mxu0 %v184
  %v224 = vpop.f32.mrf.mxu0
  %v225 = vadd.f32 0.0, %v224
  %226 = vmatmul.f32.gmra.mxu0 %v187
  %v227 = vpop.f32.mrf.mxu0
  %v228 = vadd.f32 0.0, %v227
  %229 = vdwg.mxu0
  %v230 = vld [vmem:[%s3] sm:$0xff]
  %v231 = vld [vmem:[%s3 + $0x8] sm:$0xff]
  %v232 = vld [vmem:[%s3 + $0x10] sm:$0xff]
  %v233 = vld [vmem:[%s3 + $0x18] sm:$0xff]
  %v234 = vld [vmem:[%s3 + $0x20] sm:$0xff]
  %v235 = vld [vmem:[%s3 + $0x28] sm:$0xff]
  %v236 = vld [vmem:[%s3 + $0x30] sm:$0xff]
  %v237 = vld [vmem:[%s3 + $0x38] sm:$0xff]
  %239 = vset.pattern.permute.xlu0 0
  %240 = vperm.xlu0 %239, %v35
  %v241 = vpop.permute.xlu0 %240
  %244 = vset.pattern.permute.xlu0 0
  %245 = vperm.xlu0 %244, %v36
  %v246 = vpop.permute.xlu0 %245
  %249 = vset.pattern.permute.xlu0 0
  %250 = vperm.xlu0 %249, %v37
  %v251 = vpop.permute.xlu0 %250
  %254 = vset.pattern.permute.xlu0 0
  %255 = vperm.xlu0 %254, %v38
  %v256 = vpop.permute.xlu0 %255
  %259 = vset.pattern.permute.xlu0 0
  %260 = vperm.xlu0 %259, %v39
  %v261 = vpop.permute.xlu0 %260
  %264 = vset.pattern.permute.xlu0 0
  %265 = vperm.xlu0 %264, %v40
  %v266 = vpop.permute.xlu0 %265
  %269 = vset.pattern.permute.xlu0 0
  %270 = vperm.xlu0 %269, %v41
  %v271 = vpop.permute.xlu0 %270
  %274 = vset.pattern.permute.xlu0 0
  %275 = vperm.xlu0 %274, %v42
  %v276 = vpop.permute.xlu0 %275
  %278 = vmatpush.msra.mxu0 %v161
  %279 = vmatpush.msra.mxu0 %v158
  %280 = vmatpush.msra.mxu0 %v155
  %281 = vmatpush.msra.mxu0 %v152
  %282 = vmatpush.msra.mxu0 %v149
  %283 = vmatpush.msra.mxu0 %v146
  %284 = vmatpush.msra.mxu0 %v143
  %285 = vmatpush.msra.mxu0 %v140
  %286 = vmatpush.msra.mxu0 %v228
  %287 = vmatpush.msra.mxu0 %v225
  %288 = vmatpush.msra.mxu0 %v222
  %289 = vmatpush.msra.mxu0 %v219
  %290 = vmatpush.msra.mxu0 %v216
  %291 = vmatpush.msra.mxu0 %v213
  %292 = vmatpush.msra.mxu0 %v210
  %293 = vmatpush.msra.mxu0 %v207
  %294 = vmatmul.f32.gmra.mxu0 %v230
  %v295 = vpop.f32.mrf.mxu0
  %v296 = vadd.f32 %v241, %v295
  %297 = vmatmul.f32.gmra.mxu0 %v231
  %v298 = vpop.f32.mrf.mxu0
  %v299 = vadd.f32 %v246, %v298
  %300 = vmatmul.f32.gmra.mxu0 %v232
  %v301 = vpop.f32.mrf.mxu0
  %v302 = vadd.f32 %v251, %v301
  %303 = vmatmul.f32.gmra.mxu0 %v233
  %v304 = vpop.f32.mrf.mxu0
  %v305 = vadd.f32 %v256, %v304
  %306 = vmatmul.f32.gmra.mxu0 %v234
  %v307 = vpop.f32.mrf.mxu0
  %v308 = vadd.f32 %v261, %v307
  %309 = vmatmul.f32.gmra.mxu0 %v235
  %v310 = vpop.f32.mrf.mxu0
  %v311 = vadd.f32 %v266, %v310
  %312 = vmatmul.f32.gmra.mxu0 %v236
  %v313 = vpop.f32.mrf.mxu0
  %v314 = vadd.f32 %v271, %v313
  %315 = vmatmul.f32.gmra.mxu0 %v237
  %v316 = vpop.f32.mrf.mxu0
  %v317 = vadd.f32 %v276, %v316
  %318 = vdwg.mxu0
  %v319 = vtanh.pop %v296
  %v320 = vtanh.pop %v299
  %v321 = vtanh.pop %v302
  %v322 = vtanh.pop %v305
  %v323 = vtanh.pop %v308
  %v324 = vtanh.pop %v311
  %v325 = vtanh.pop %v314
  %v326 = vtanh.pop %v317
  %v327 = vld [vmem:[%s4] sm:$0xff]
  %v328 = vld [vmem:[%s4 + $0x8] sm:$0xff]
  %330 = vset.pattern.permute.xlu0 0
  %331 = vperm.xlu0 %330, %v43
  %v332 = vpop.permute.xlu0 %331
  %335 = vset.pattern.permute.xlu0 0
  %336 = vperm.xlu0 %335, %v44
  %v337 = vpop.permute.xlu0 %336
  %vm339 = vcmask 523264
  %v341 = vsel %vm339, %v327, 0
  %v344 = vsel %vm339, %v328, 0
  %346 = vmatpush.msra.mxu0 0.0
  %347 = vmatpush.msra.mxu0 0.0
  %348 = vmatpush.msra.mxu0 0.0
  %349 = vmatpush.msra.mxu0 0.0
  %350 = vmatpush.msra.mxu0 0.0
  %351 = vmatpush.msra.mxu0 0.0
  %352 = vmatpush.msra.mxu0 0.0
  %353 = vmatpush.msra.mxu0 0.0
  %354 = vmatpush.msra.mxu0 %v326
  %355 = vmatpush.msra.mxu0 %v325
  %356 = vmatpush.msra.mxu0 %v324
  %357 = vmatpush.msra.mxu0 %v323
  %358 = vmatpush.msra.mxu0 %v322
  %359 = vmatpush.msra.mxu0 %v321
  %360 = vmatpush.msra.mxu0 %v320
  %361 = vmatpush.msra.mxu0 %v319
  %362 = vmatmul.f32.gmra.mxu0 %v341
  %v363 = vpop.f32.mrf.mxu0
  %v364 = vadd.f32 %v332, %v363
  %365 = vmatmul.f32.gmra.mxu0 %v344
  %v366 = vpop.f32.mrf.mxu0
  %v367 = vadd.f32 %v337, %v366
  %368 = vdwg.mxu0
  %v369 = vtanh.pop %v364
  %v370 = vtanh.pop %v367
  %371 = vst.msk [vmem:[%s6] sm:$0xff] %vm164, %v369
  %v372 = vadd.f32 %v370, 0.37816456
  %v373 = vmax.f32 %v372, 0.0
  %vm374 = vcmp.ne.f32.partialorder %v372, %v372
  %v375 = vadd.f32 %v372, 0.0
  %v376 = vand.u32 2147483647, %v372
  %v377 = vsub.f32 0.0, %v376
  %v378 = vmul.f32 %v377, 1.442695
  %v379 = vpow.pop %v378
  %v380 = vadd.f32 %v379, 1.0
  %v381 = vlog2.pop %v380
  %v382 = vmul.f32 %v381, 0.6931472
  %v383 = vmul.f32 -0.5, %v379
  %v384 = vadd.f32 %v383, 1.0
  %v385 = vmul.f32 %v384, %v379
  %v386 = vand.u32 2147483647, %v379
  %vm387 = vcmp.lt.f32.partialorder %v386, 0.0004427343
  %v388 = vsel %vm387, %v385, %v382
  %v389 = vadd.f32 %v373, %v388
  %v390 = vsel %vm374, %v375, %v389
  %v391 = vadd.f32 %v390, 0.1
  %392 = vst.msk [vmem:[%s6 + $0x8] sm:$0xff] %vm164, %v391
  // Predicated region
  $region26: #{single_node_actor_forward.1} parent=0 // pred_check
    _
  $region27: #{single_node_actor_forward.1} parent=0 // pred_check_branch
    %394 = sbr.rel (0) target = $region29
  $region28: #{single_node_actor_forward.1} parent=0 // pred_region
    _
  $region29: #{single_node_actor_forward.1} parent=0 // pred_fallthru
    _
  // Predicated region
  $region30: #{single_node_actor_forward.1} parent=0 // pred_check
    _
  $region31: #{single_node_actor_forward.1} parent=0 // pred_check_branch
    %396 = sbr.rel (0) target = $region33
  $region32: #{single_node_actor_forward.1} parent=0 // pred_region
    _
  $region33: #{single_node_actor_forward.1} parent=0 // pred_fallthru
    _

</llo_original>
